<compile_context>
chip_gen: v7x
topology: tpu7x:2x2x1
jax: 0.10.0
libtpu: 0.0.40
codegen_flags: <defaults>
</compile_context>

<pallas_src>
import functools
import math

import jax
import jax.numpy as jnp
from jax import lax
from jax.experimental import pallas as pl
from jax.experimental.pallas import tpu as pltpu


def _mha_kernel(x_ref, wqkv_ref, wo_ref, bo_ref, out_ref, *,
                num_heads: int, head_dim: int, compute_dtype):
    # x_ref:    (1, T, D_in)          one batch element per grid step
    # wqkv_ref: (D_in, 3*D_out)       [Wq*scale | Wk | Wv], head-interleaved per block
    # wo_ref:   (D_out, D_out)
    # bo_ref:   (1, D_out)
    # out_ref:  (1, T, D_out)
    T = x_ref.shape[1]
    D_out = out_ref.shape[2]
    H, hd = num_heads, head_dim

    # Additive causal bias built once per grid step, shared across all heads.
    # Diagonal is always unmasked, so no all--inf softmax rows.
    row = lax.broadcasted_iota(jnp.int32, (T, T), 0)
    col = lax.broadcasted_iota(jnp.int32, (T, T), 1)
    bias = jnp.where(col > row, -jnp.inf, 0.0).astype(jnp.float32)[None]  # (1,T,T)

    x = x_ref[0].astype(compute_dtype)                      # (T, D_in)
    wqkv = wqkv_ref[...].astype(compute_dtype)              # (D_in, 3*D_out)
    wo = wo_ref[...].astype(compute_dtype)                  # (D_out, D_out)
    bo = bo_ref[...]                                        # (1, D_out) f32

    # ---- Fused QKV projection: one matmul, N = 3*D_out (full MXU width use).
    qkv = jnp.dot(x, wqkv, preferred_element_type=jnp.float32)  # (T, 3*D_out)

    def split_heads(m):
        # (T, D_out) -> (H, T, hd); lane slices stacked on a new leading axis.
        # Layout plumbing only — no matmuls inside this loop.
        return jnp.concatenate(
            [m[:, h * hd:(h + 1) * hd][None] for h in range(H)], axis=0)

    q = split_heads(qkv[:, 0 * D_out:1 * D_out])   # (H, T, hd); scale pre-folded
    k = split_heads(qkv[:, 1 * D_out:2 * D_out])   # (H, T, hd)
    v = split_heads(qkv[:, 2 * D_out:3 * D_out])   # (H, T, hd)

    qk_dn = (((2,), (2,)), ((0,), (0,)))   # q · kᵀ without materializing kᵀ
    av_dn = (((2,), (1,)), ((0,), (0,)))   # attn · v

    # ---- Scores for all heads in one batched contraction; additive causal mask.
    scores = lax.dot_general(q.astype(compute_dtype), k.astype(compute_dtype),
                             qk_dn, preferred_element_type=jnp.float32)  # (H,T,T)
    scores = scores + bias

    # ---- Numerically-stable softmax (f32); reciprocal on the EUP slot.
    m_ = jnp.max(scores, axis=-1, keepdims=True)
    e = jnp.exp(scores - m_)
    denom = jnp.sum(e, axis=-1, keepdims=True)
    attn = e * pl.reciprocal(denom, approx=True)                        # (H,T,T)
    # TODO(synk): attention-weight dropout omitted (inference / p = 0.0 path).

    ctx = lax.dot_general(attn.astype(compute_dtype), v.astype(compute_dtype),
                          av_dn, preferred_element_type=jnp.float32)    # (H,T,hd)

    # ---- Output projection: concat heads along lanes, ONE matmul with K = D_out.
    ctx_flat = jnp.concatenate([ctx[h] for h in range(H)], axis=-1)     # (T, D_out)
    out = jnp.dot(ctx_flat.astype(compute_dtype), wo,
                  preferred_element_type=jnp.float32) + bo              # (T, D_out)
    out_ref[0] = out.astype(out_ref.dtype)


def multi_head_attention(x, wq, wk, wv, wo, bo, *, num_heads: int,
                         compute_dtype=jnp.float32):
    """Causal multi-head attention matching the PyTorch module's forward.

    x: (B, T, D_in); wq/wk/wv: (D_in, D_out) [i.e. torch weight transposed];
    wo: (D_out, D_out); bo: (D_out,).  compute_dtype=jnp.bfloat16 feeds the MXU
    bf16 operands with f32 accumulation (recommended on v6e/v7x at real dims);
    the default f32 keeps numerics aligned with the PyTorch reference.
    """
    B, T, D_in = x.shape
    D_out = wq.shape[1]
    assert D_out % num_heads == 0, "d_out must be divisible by num_heads"
    head_dim = D_out // num_heads

    # Host-side (free) weight prep: fold 1/sqrt(head_dim) into the Q columns
    # and fuse [Wq | Wk | Wv] into one (D_in, 3*D_out) matrix so the kernel's
    # QKV projection is a single wide matmul.
    scale = 1.0 / math.sqrt(head_dim)
    w_qkv = jnp.concatenate(
        [wq.astype(jnp.float32) * scale,
         wk.astype(jnp.float32),
         wv.astype(jnp.float32)], axis=1).astype(x.dtype)        # (D_in, 3*D_out)
    bo2 = bo.reshape(1, D_out).astype(jnp.float32)

    kernel = functools.partial(_mha_kernel, num_heads=num_heads,
                               head_dim=head_dim, compute_dtype=compute_dtype)

    # Advisory cost hint for XLA's scheduler around the custom call.
    flops = B * (2 * T * D_in * 3 * D_out            # fused QKV projection
                 + 2 * num_heads * T * T * head_dim  # scores
                 + 2 * num_heads * T * T * head_dim  # attn @ v
                 + 2 * T * D_out * D_out)            # output projection
    bytes_accessed = 4 * (x.size + w_qkv.size + wo.size + bo2.size + B * T * D_out)
    cost = pl.CostEstimate(flops=flops,
                           transcendentals=B * num_heads * T * T,
                           bytes_accessed=bytes_accessed)

    # NOTE: at real model dims pad / tile so the output last dim is a multiple
    # of 128 (lane-dense stores); at D_out=32 the masked vst is unavoidable.
    return pl.pallas_call(
        kernel,
        out_shape=jax.ShapeDtypeStruct((B, T, D_out), x.dtype),
        grid_spec=pltpu.PrefetchScalarGridSpec(
            num_scalar_prefetch=0,
            grid=(B,),                         # batch as a (parallel) grid axis
            in_specs=[
                pl.BlockSpec((1, T, D_in), lambda b: (b, 0, 0)),
                pl.BlockSpec((D_in, 3 * D_out), lambda b: (0, 0)),
                pl.BlockSpec((D_out, D_out), lambda b: (0, 0)),
                pl.BlockSpec((1, D_out), lambda b: (0, 0)),
            ],
            out_specs=pl.BlockSpec((1, T, D_out), lambda b: (b, 0, 0)),
        ),
        compiler_params=pltpu.CompilerParams(
            dimension_semantics=("parallel",)),
        cost_estimate=cost,
    )(x, w_qkv, wo, bo2)


def _reference(x, wq, wk, wv, wo, bo, num_heads):
    B, T, D_in = x.shape
    D_out = wq.shape[1]
    hd = D_out // num_heads
    q = (x @ wq).reshape(B, T, num_heads, hd).transpose(0, 2, 1, 3)
    k = (x @ wk).reshape(B, T, num_heads, hd).transpose(0, 2, 1, 3)
    v = (x @ wv).reshape(B, T, num_heads, hd).transpose(0, 2, 1, 3)
    scores = q @ jnp.swapaxes(k, -1, -2)
    mask = jnp.triu(jnp.ones((T, T), bool), k=1)
    scores = jnp.where(mask, -jnp.inf, scores)
    w = jax.nn.softmax(scores / math.sqrt(hd), axis=-1)
    ctx = (w @ v).transpose(0, 2, 1, 3).reshape(B, T, D_out)
    return ctx @ wo + bo


if __name__ == "__main__":
    # Module hyperparams: d_in=32, d_out=32, context_length=8, dropout=0.0, num_heads=4
    B, T, D_IN, D_OUT, NUM_HEADS = 2, 8, 32, 32, 4

    key = jax.random.PRNGKey(0)
    kx, kq, kk, kv, ko, kb = jax.random.split(key, 6)

    x = jax.random.normal(kx, (B, T, D_IN), dtype=jnp.float32)
    # Deterministic weights; stored as (in_features, out_features) == torch W.T.
    wq = jax.random.normal(kq, (D_IN, D_OUT), dtype=jnp.float32) * 0.1
    wk = jax.random.normal(kk, (D_IN, D_OUT), dtype=jnp.float32) * 0.1
    wv = jax.random.normal(kv, (D_IN, D_OUT), dtype=jnp.float32) * 0.1
    wo = jax.random.normal(ko, (D_OUT, D_OUT), dtype=jnp.float32) * 0.1
    bo = jax.random.normal(kb, (D_OUT,), dtype=jnp.float32) * 0.1

    out = multi_head_attention(x, wq, wk, wv, wo, bo, num_heads=NUM_HEADS)
    out = jax.block_until_ready(out)

    ref = _reference(x, wq, wk, wv, wo, bo, NUM_HEADS)
    assert out.shape == (B, T, D_OUT)
    # Tolerance loosened vs. exact f32 because the softmax denominator uses the
    # approximate (EUP) reciprocal and the 1/sqrt(hd) scale is folded into Wq.
    assert jnp.allclose(out, ref, atol=1e-2, rtol=1e-2), (
        float(jnp.max(jnp.abs(out - ref))))

    print("KERNEL_OK")
</pallas_src>

<mosaic_0001>
module attributes {stable_mosaic.version = 11 : i64} {
  func.func @_mha_kernel(%arg0: i32, %arg1: memref<1x8x32xf32, #tpu.memory_space<vmem>>, %arg2: memref<32x96xf32, #tpu.memory_space<vmem>>, %arg3: memref<32x32xf32, #tpu.memory_space<vmem>>, %arg4: memref<1x32xf32, #tpu.memory_space<vmem>>, %arg5: memref<1x8x32xf32, #tpu.memory_space<vmem>>) attributes {dimension_semantics = [#tpu.dimension_semantics<parallel>], iteration_bounds = array<i64: 2>, scalar_prefetch = 0 : i64, scratch_operands = 0 : i64, tpu.core_type = #tpu.core_type<tc>, window_params = [{transform_indices = @transform_0, window_bounds = array<i64: 1, 8, 32>}, {pipeline_mode = #tpu.pipeline_mode<synchronous>, transform_indices = @transform_1, window_bounds = array<i64: 32, 96>}, {pipeline_mode = #tpu.pipeline_mode<synchronous>, transform_indices = @transform_2, window_bounds = array<i64: 32, 32>}, {pipeline_mode = #tpu.pipeline_mode<synchronous>, transform_indices = @transform_3, window_bounds = array<i64: 1, 32>}, {transform_indices = @transform_4, window_bounds = array<i64: 1, 8, 32>}]} {
    %0 = tpu.iota {dimensions = array<i32: 0>} : vector<8x8xi32>
    %1 = tpu.iota {dimensions = array<i32: 1>} : vector<8x8xi32>
    %2 = arith.cmpi sgt, %1, %0 : vector<8x8xi32>
    %cst = arith.constant 0xFF800000 : f32
    %cst_0 = arith.constant 0.000000e+00 : f32
    %3 = vector.broadcast %cst : f32 to vector<8x8xf32>
    %4 = vector.broadcast %cst_0 : f32 to vector<8x8xf32>
    %5 = arith.select %2, %3, %4 : vector<8x8xi1>, vector<8x8xf32>
    %6 = vector.shape_cast %5 : vector<8x8xf32> to vector<1x8x8xf32>
    %c0 = arith.constant 0 : index
    %c0_1 = arith.constant 0 : index
    %c0_2 = arith.constant 0 : index
    %7 = vector.load %arg1[%c0, %c0_1, %c0_2] : memref<1x8x32xf32, #tpu.memory_space<vmem>>, vector<1x8x32xf32>
    %8 = vector.shape_cast %7 : vector<1x8x32xf32> to vector<8x32xf32>
    %c0_3 = arith.constant 0 : index
    %c0_4 = arith.constant 0 : index
    %9 = vector.load %arg2[%c0_3, %c0_4] : memref<32x96xf32, #tpu.memory_space<vmem>>, vector<32x96xf32>
    %c0_5 = arith.constant 0 : index
    %c0_6 = arith.constant 0 : index
    %10 = vector.load %arg3[%c0_5, %c0_6] : memref<32x32xf32, #tpu.memory_space<vmem>>, vector<32x32xf32>
    %c0_7 = arith.constant 0 : index
    %c0_8 = arith.constant 0 : index
    %11 = vector.load %arg4[%c0_7, %c0_8] : memref<1x32xf32, #tpu.memory_space<vmem>>, vector<1x32xf32>
    %cst_9 = arith.constant dense<0.000000e+00> : vector<8x96xf32>
    %12 = tpu.matmul %8, %9, %cst_9 {dimension_numbers = #tpu.dot_dimension_numbers<[1], [0], [0], [1], [0, 0, 1, 1], [], []>} : vector<8x32xf32>, vector<32x96xf32>, vector<8x96xf32> -> vector<8x96xf32>
    %13 = vector.extract_strided_slice %12 {offsets = [0, 0], sizes = [8, 32], strides = [1, 1]} : vector<8x96xf32> to vector<8x32xf32>
    %14 = vector.extract_strided_slice %13 {offsets = [0, 0], sizes = [8, 8], strides = [1, 1]} : vector<8x32xf32> to vector<8x8xf32>
    %15 = vector.shape_cast %14 : vector<8x8xf32> to vector<1x8x8xf32>
    %16 = vector.extract_strided_slice %13 {offsets = [0, 8], sizes = [8, 8], strides = [1, 1]} : vector<8x32xf32> to vector<8x8xf32>
    %17 = vector.shape_cast %16 : vector<8x8xf32> to vector<1x8x8xf32>
    %18 = vector.extract_strided_slice %13 {offsets = [0, 16], sizes = [8, 8], strides = [1, 1]} : vector<8x32xf32> to vector<8x8xf32>
    %19 = vector.shape_cast %18 : vector<8x8xf32> to vector<1x8x8xf32>
    %20 = vector.extract_strided_slice %13 {offsets = [0, 24], sizes = [8, 8], strides = [1, 1]} : vector<8x32xf32> to vector<8x8xf32>
    %21 = vector.shape_cast %20 : vector<8x8xf32> to vector<1x8x8xf32>
    %22 = tpu.concatenate %15, %17, %19, %21 in 0 : vector<1x8x8xf32>, vector<1x8x8xf32>, vector<1x8x8xf32>, vector<1x8x8xf32> -> vector<4x8x8xf32>
    %23 = vector.extract_strided_slice %12 {offsets = [0, 32], sizes = [8, 32], strides = [1, 1]} : vector<8x96xf32> to vector<8x32xf32>
    %24 = vector.extract_strided_slice %23 {offsets = [0, 0], sizes = [8, 8], strides = [1, 1]} : vector<8x32xf32> to vector<8x8xf32>
    %25 = vector.shape_cast %24 : vector<8x8xf32> to vector<1x8x8xf32>
    %26 = vector.extract_strided_slice %23 {offsets = [0, 8], sizes = [8, 8], strides = [1, 1]} : vector<8x32xf32> to vector<8x8xf32>
    %27 = vector.shape_cast %26 : vector<8x8xf32> to vector<1x8x8xf32>
    %28 = vector.extract_strided_slice %23 {offsets = [0, 16], sizes = [8, 8], strides = [1, 1]} : vector<8x32xf32> to vector<8x8xf32>
    %29 = vector.shape_cast %28 : vector<8x8xf32> to vector<1x8x8xf32>
    %30 = vector.extract_strided_slice %23 {offsets = [0, 24], sizes = [8, 8], strides = [1, 1]} : vector<8x32xf32> to vector<8x8xf32>
    %31 = vector.shape_cast %30 : vector<8x8xf32> to vector<1x8x8xf32>
    %32 = tpu.concatenate %25, %27, %29, %31 in 0 : vector<1x8x8xf32>, vector<1x8x8xf32>, vector<1x8x8xf32>, vector<1x8x8xf32> -> vector<4x8x8xf32>
    %33 = vector.extract_strided_slice %12 {offsets = [0, 64], sizes = [8, 32], strides = [1, 1]} : vector<8x96xf32> to vector<8x32xf32>
    %34 = vector.extract_strided_slice %33 {offsets = [0, 0], sizes = [8, 8], strides = [1, 1]} : vector<8x32xf32> to vector<8x8xf32>
    %35 = vector.shape_cast %34 : vector<8x8xf32> to vector<1x8x8xf32>
    %36 = vector.extract_strided_slice %33 {offsets = [0, 8], sizes = [8, 8], strides = [1, 1]} : vector<8x32xf32> to vector<8x8xf32>
    %37 = vector.shape_cast %36 : vector<8x8xf32> to vector<1x8x8xf32>
    %38 = vector.extract_strided_slice %33 {offsets = [0, 16], sizes = [8, 8], strides = [1, 1]} : vector<8x32xf32> to vector<8x8xf32>
    %39 = vector.shape_cast %38 : vector<8x8xf32> to vector<1x8x8xf32>
    %40 = vector.extract_strided_slice %33 {offsets = [0, 24], sizes = [8, 8], strides = [1, 1]} : vector<8x32xf32> to vector<8x8xf32>
    %41 = vector.shape_cast %40 : vector<8x8xf32> to vector<1x8x8xf32>
    %42 = tpu.concatenate %35, %37, %39, %41 in 0 : vector<1x8x8xf32>, vector<1x8x8xf32>, vector<1x8x8xf32>, vector<1x8x8xf32> -> vector<4x8x8xf32>
    %cst_10 = arith.constant dense<0.000000e+00> : vector<4x8x8xf32>
    %43 = tpu.matmul %22, %32, %cst_10 {dimension_numbers = #tpu.dot_dimension_numbers<[2], [2], [1], [1], [0, 0, 0, 1, 1, 1], [0], [0]>} : vector<4x8x8xf32>, vector<4x8x8xf32>, vector<4x8x8xf32> -> vector<4x8x8xf32>
    %44 = vector.broadcast %6 : vector<1x8x8xf32> to vector<4x8x8xf32>
    %45 = arith.addf %43, %44 : vector<4x8x8xf32>
    %cst_11 = arith.constant dense<0xFF800000> : vector<4x8xf32>
    %46 = vector.multi_reduction <maximumf>, %45, %cst_11 [2] : vector<4x8x8xf32> to vector<4x8xf32>
    %47 = vector.shape_cast %46 : vector<4x8xf32> to vector<4x8x1xf32>
    %48 = vector.broadcast %47 : vector<4x8x1xf32> to vector<4x8x8xf32>
    %49 = arith.subf %45, %48 : vector<4x8x8xf32>
    %50 = math.exp %49 : vector<4x8x8xf32>
    %cst_12 = arith.constant dense<0.000000e+00> : vector<4x8xf32>
    %51 = vector.multi_reduction <add>, %50, %cst_12 [2] : vector<4x8x8xf32> to vector<4x8xf32>
    %52 = vector.shape_cast %51 : vector<4x8xf32> to vector<4x8x1xf32>
    %53 = tpu.reciprocal %52 {approx = true} : vector<4x8x1xf32> -> vector<4x8x1xf32>
    %54 = vector.broadcast %53 : vector<4x8x1xf32> to vector<4x8x8xf32>
    %55 = arith.mulf %50, %54 : vector<4x8x8xf32>
    %cst_13 = arith.constant dense<0.000000e+00> : vector<4x8x8xf32>
    %56 = tpu.matmul %55, %42, %cst_13 {dimension_numbers = #tpu.dot_dimension_numbers<[2], [1], [1], [2], [0, 0, 0, 1, 1, 2], [0], [0]>} : vector<4x8x8xf32>, vector<4x8x8xf32>, vector<4x8x8xf32> -> vector<4x8x8xf32>
    %57 = vector.extract_strided_slice %56 {offsets = [0, 0, 0], sizes = [1, 8, 8], strides = [1, 1, 1]} : vector<4x8x8xf32> to vector<1x8x8xf32>
    %58 = vector.shape_cast %57 : vector<1x8x8xf32> to vector<8x8xf32>
    %59 = vector.extract_strided_slice %56 {offsets = [1, 0, 0], sizes = [1, 8, 8], strides = [1, 1, 1]} : vector<4x8x8xf32> to vector<1x8x8xf32>
    %60 = vector.shape_cast %59 : vector<1x8x8xf32> to vector<8x8xf32>
    %61 = vector.extract_strided_slice %56 {offsets = [2, 0, 0], sizes = [1, 8, 8], strides = [1, 1, 1]} : vector<4x8x8xf32> to vector<1x8x8xf32>
    %62 = vector.shape_cast %61 : vector<1x8x8xf32> to vector<8x8xf32>
    %63 = vector.extract_strided_slice %56 {offsets = [3, 0, 0], sizes = [1, 8, 8], strides = [1, 1, 1]} : vector<4x8x8xf32> to vector<1x8x8xf32>
    %64 = vector.shape_cast %63 : vector<1x8x8xf32> to vector<8x8xf32>
    %65 = tpu.concatenate %58, %60, %62, %64 in 1 : vector<8x8xf32>, vector<8x8xf32>, vector<8x8xf32>, vector<8x8xf32> -> vector<8x32xf32>
    %cst_14 = arith.constant dense<0.000000e+00> : vector<8x32xf32>
    %66 = tpu.matmul %65, %10, %cst_14 {dimension_numbers = #tpu.dot_dimension_numbers<[1], [0], [0], [1], [0, 0, 1, 1], [], []>} : vector<8x32xf32>, vector<32x32xf32>, vector<8x32xf32> -> vector<8x32xf32>
    %67 = vector.broadcast %11 : vector<1x32xf32> to vector<8x32xf32>
    %68 = arith.addf %66, %67 : vector<8x32xf32>
    %c0_15 = arith.constant 0 : index
    %c0_16 = arith.constant 0 : index
    %c0_17 = arith.constant 0 : index
    %69 = vector.load %arg5[%c0_15, %c0_16, %c0_17] : memref<1x8x32xf32, #tpu.memory_space<vmem>>, vector<1x8x32xf32>
    %70 = vector.shape_cast %69 : vector<1x8x32xf32> to vector<8x32xf32>
    %71 = vector.shape_cast %68 : vector<8x32xf32> to vector<1x8x32xf32>
    tpu.vector_store %arg5[%c0_15, %c0_16, %c0_17], %71 {strides = array<i32>} : memref<1x8x32xf32, #tpu.memory_space<vmem>>, vector<1x8x32xf32>,
    return
  }
  func.func @transform_0(%arg0: i32) -> (i32, i32, i32) {
    %c0_i32 = arith.constant 0 : i32
    %c0_i32_0 = arith.constant 0 : i32
    %c0_i32_1 = arith.constant 0 : i32
    return %arg0, %c0_i32, %c0_i32_0 : i32, i32, i32
  }
  func.func @transform_1(%arg0: i32) -> (i32, i32) {
    %c0_i32 = arith.constant 0 : i32
    %c0_i32_0 = arith.constant 0 : i32
    %c0_i32_1 = arith.constant 0 : i32
    return %c0_i32, %c0_i32_0 : i32, i32
  }
  func.func @transform_2(%arg0: i32) -> (i32, i32) {
    %c0_i32 = arith.constant 0 : i32
    %c0_i32_0 = arith.constant 0 : i32
    %c0_i32_1 = arith.constant 0 : i32
    return %c0_i32, %c0_i32_0 : i32, i32
  }
  func.func @transform_3(%arg0: i32) -> (i32, i32) {
    %c0_i32 = arith.constant 0 : i32
    %c0_i32_0 = arith.constant 0 : i32
    %c0_i32_1 = arith.constant 0 : i32
    return %c0_i32, %c0_i32_0 : i32, i32
  }
  func.func @transform_4(%arg0: i32) -> (i32, i32, i32) {
    %c0_i32 = arith.constant 0 : i32
    %c0_i32_0 = arith.constant 0 : i32
    %c0_i32_1 = arith.constant 0 : i32
    return %arg0, %c0_i32, %c0_i32_0 : i32, i32, i32
  }
}

</mosaic_0001>

<llo_original>
// kernel: tpu_custom_call.1
$region0: #{tpu_custom_call.1}
  #allocation0 [shape = 'u32[]', space=smem, size = 0x4, offset = 0x4, fixed_abs, tag = 'smem constant byte address 0x4 - core index']
  #allocation1 [shape = 'u32[144,128]{1,0:T(1,128)}', space=vmem, size = 0x12000, scoped, tag = 'internal scratch']
  %s0 = inlined_call_operand.hbm [shape: f32[2,8,32], index: 0, kind: input, shape index: {}]
  %s1 = inlined_call_operand.hbm [shape: f32[32,96], index: 1, kind: input, shape index: {}]
  %s2 = inlined_call_operand.hbm [shape: f32[32,32], index: 2, kind: input, shape index: {}]
  %s3 = inlined_call_operand.vmem [shape: f32[1,32], index: 3, kind: input, shape index: {}]
  %s4 = inlined_call_operand.hbm [shape: f32[2,8,32], index: 4, kind: output, shape index: {}]
  %s5 = sld [smem:[#allocation0]]
  $region61: #{tpu_custom_call.1} parent=0
    _
  %s7 = ssub.s32 1, %s5
  %s8 = scalar_select 0, %s7, %s5
  $region1: #{tpu_custom_call.1} parent=0
    #allocation2 [shape = 'u8[8192]{0}', space=vmem, size = 0x2000, scoped, tag = 'input window, operand 0']
    #allocation3 [shape = 's32[2]{0}', space=sflag, size = 0x8, scoped, tag = 'scoped memory for tpu_custom_call.1']
    #allocation4 [shape = 's32[2]{0}', space=sflag, size = 0x8, scoped, tag = 'scoped memory for tpu_custom_call.1']
    #allocation5 [shape = 'u8[16384]{0}', space=vmem, size = 0x4000, scoped, tag = 'input window, operand 1, single buffered']
    #allocation6 [shape = 's32[1]{0}', space=sflag, size = 0x4, scoped, tag = 'scoped memory for tpu_custom_call.1']
    #allocation7 [shape = 'u8[16384]{0}', space=vmem, size = 0x4000, scoped, tag = 'input window, operand 2, single buffered']
    #allocation8 [shape = 'u8[8192]{0}', space=vmem, size = 0x2000, scoped, tag = 'output window, operand 0']
    %9 = vsyncpa [#allocation3], 0
    %s10 = scalar_lea.sflag [#allocation3], 1
    %11 = vsyncpa %s10, 0
    %12 = vsyncpa [#allocation6], 0
    %13 = vsyncpa [#allocation4], 0
    %s14 = scalar_lea.sflag [#allocation4], 1
    %15 = vsyncpa %s14, 0
    loop: start=0, step=1, limit=4
    $region2: #{tpu_custom_call.1} parent=1 // loop_pre_header
      _
    $region3: #{tpu_custom_call.1} parent=1 // loop_header
      %s17 = sphi 0, %s21
      %p18 = scmp.ge.s32.totalorder %s17, 4
      %s27 = sphi 0, %s29
      %s30 = sphi 0, %s27
      %s31 = sphi 0, %s30
      %s47 = sphi 0, %s31
      %s51 = sphi 0, %s51
      %s53 = sphi 0, %s51
      %s54 = sphi 0, %s53
      %s68 = sphi 0, %s54
      %s72 = sphi 0, %s72
      %s74 = sphi 0, %s72
      %s75 = sphi 0, %s74
      %s89 = sphi 0, %s75
      %s93 = sphi 0, %s93
      %s95 = sphi 0, %s93
      %s96 = sphi 0, %s95
      %s110 = sphi 0, %s96
      %s116 = sphi 0, %s118
      %s119 = sphi 0, %s116
      %s120 = sphi 0, %s119
      %s136 = sphi 0, %s120
    $region4: #{tpu_custom_call.1} parent=1 // loop_header_branch
      %20 = sbr.rel (%p18) target = $region8
    $region5: #{tpu_custom_call.1} parent=1 // loop_body
      %s22 = ssub.s32 %s17, 1
      %s23 = ssub.s32 %s17, 2
      %s24 = sadd.s32 %s17, 1
      %s25 = ssub.s32 %s17, %s24
      %p26 = scmp.eq.s32.totalorder %s25, 0
      %s28 = sadd.s32 %s27, 1
      %s29 = scalar_select %p26, %s27, %s28
      %p32 = pneg %p26
      %p33 = scmp.eq.s32.totalorder %s17, 1
      %p34 = por %p32, %p33
      %p35 = scmp.ne.s32.totalorder %s27, %s30
      %p36 = scmp.eq.s32.totalorder %s17, 0
      %p37 = por %p35, %p36
      %p38 = scmp.ne.s32.totalorder %s27, %s30
      %p39 = scmp.eq.s32.totalorder %s22, 1
      %p40 = por %p38, %p39
      %p41 = scmp.ne.s32.totalorder %s30, %s31
      %p42 = scmp.eq.s32.totalorder %s22, 0
      %p43 = por %p41, %p42
      %p44 = scmp.ne.s32.totalorder %s30, %s31
      %p45 = scmp.eq.s32.totalorder %s23, 1
      %p46 = por %p44, %p45
      %p48 = scmp.ne.s32.totalorder %s31, %s47
      %p49 = scmp.eq.s32.totalorder %s23, 0
      %p50 = por %p48, %p49
      %s52 = sadd.s32 %s51, 1
      %p55 = scmp.eq.s32.totalorder %s17, 1
      %p56 = scmp.ne.s32.totalorder %s51, %s53
      %p57 = scmp.eq.s32.totalorder %s17, 0
      %p58 = por %p56, %p57
      %p59 = scmp.ne.s32.totalorder %s51, %s53
      %p60 = scmp.eq.s32.totalorder %s22, 1
      %p61 = por %p59, %p60
      %p62 = scmp.ne.s32.totalorder %s53, %s54
      %p63 = scmp.eq.s32.totalorder %s22, 0
      %p64 = por %p62, %p63
      %p65 = scmp.ne.s32.totalorder %s53, %s54
      %p66 = scmp.eq.s32.totalorder %s23, 1
      %p67 = por %p65, %p66
      %p69 = scmp.ne.s32.totalorder %s54, %s68
      %p70 = scmp.eq.s32.totalorder %s23, 0
      %p71 = por %p69, %p70
      %s73 = sadd.s32 %s72, 1
      %p76 = scmp.eq.s32.totalorder %s17, 1
      %p77 = scmp.ne.s32.totalorder %s72, %s74
      %p78 = scmp.eq.s32.totalorder %s17, 0
      %p79 = por %p77, %p78
      %p80 = scmp.ne.s32.totalorder %s72, %s74
      %p81 = scmp.eq.s32.totalorder %s22, 1
      %p82 = por %p80, %p81
      %p83 = scmp.ne.s32.totalorder %s74, %s75
      %p84 = scmp.eq.s32.totalorder %s22, 0
      %p85 = por %p83, %p84
      %p86 = scmp.ne.s32.totalorder %s74, %s75
      %p87 = scmp.eq.s32.totalorder %s23, 1
      %p88 = por %p86, %p87
      %p90 = scmp.ne.s32.totalorder %s75, %s89
      %p91 = scmp.eq.s32.totalorder %s23, 0
      %p92 = por %p90, %p91
      %s94 = sadd.s32 %s93, 1
      %p97 = scmp.eq.s32.totalorder %s17, 1
      %p98 = scmp.ne.s32.totalorder %s93, %s95
      %p99 = scmp.eq.s32.totalorder %s17, 0
      %p100 = por %p98, %p99
      %p101 = scmp.ne.s32.totalorder %s93, %s95
      %p102 = scmp.eq.s32.totalorder %s22, 1
      %p103 = por %p101, %p102
      %p104 = scmp.ne.s32.totalorder %s95, %s96
      %p105 = scmp.eq.s32.totalorder %s22, 0
      %p106 = por %p104, %p105
      %p107 = scmp.ne.s32.totalorder %s95, %s96
      %p108 = scmp.eq.s32.totalorder %s23, 1
      %p109 = por %p107, %p108
      %p111 = scmp.ne.s32.totalorder %s96, %s110
      %p112 = scmp.eq.s32.totalorder %s23, 0
      %p113 = por %p111, %p112
      %s114 = ssub.s32 %s17, %s24
      %p115 = scmp.eq.s32.totalorder %s114, 0
      %s117 = sadd.s32 %s116, 1
      %s118 = scalar_select %p115, %s116, %s117
      %p121 = pneg %p115
      %p122 = scmp.eq.s32.totalorder %s17, 1
      %p123 = por %p121, %p122
      %p124 = scmp.ne.s32.totalorder %s116, %s119
      %p125 = scmp.eq.s32.totalorder %s17, 0
      %p126 = por %p124, %p125
      %p127 = scmp.ne.s32.totalorder %s116, %s119
      %p128 = scmp.eq.s32.totalorder %s22, 1
      %p129 = por %p127, %p128
      %p130 = scmp.ne.s32.totalorder %s119, %s120
      %p131 = scmp.eq.s32.totalorder %s22, 0
      %p132 = por %p130, %p131
      %p133 = scmp.ne.s32.totalorder %s119, %s120
      %p134 = scmp.eq.s32.totalorder %s23, 1
      %p135 = por %p133, %p134
      %p137 = scmp.ne.s32.totalorder %s120, %s136
      %p138 = scmp.eq.s32.totalorder %s23, 0
      %p139 = por %p137, %p138
      %p140 = scmp.le.s32.totalorder 1, %s17
      %p141 = scmp.lt.s32.totalorder %s17, 3
      %p142 = pnand %p140, %p141
      %p143 = pneg %p142
      // Predicated region
      $region9: #{tpu_custom_call.1} parent=5 // pred_check
        _
      $region10: #{tpu_custom_call.1} parent=5 // pred_check_branch
        %145 = sbr.rel (%p142) target = $region12
      $region11: #{tpu_custom_call.1} parent=5 // pred_region
        %s146 = ssub.s32 %s17, 1
        // Predicated region
        $region13: #{tpu_custom_call.1} parent=11 // pred_check
          %p147 = pneg %p64
        $region14: #{tpu_custom_call.1} parent=11 // pred_check_branch
          %149 = sbr.rel (%p147) target = $region16
        $region15: #{tpu_custom_call.1} parent=11 // pred_region
          %s151 = ssub.s32 512, 512
          %152 = vsyncadd [#allocation6], %s151
          %s153 = sshll.u32 [#allocation5], 4
          %s154 = int_to_ptr.vmem [resolvable:$true] %s153
          %159 = dma.hbm_to_vmem [thread:$0]  %s1, 512, %s154, [#allocation6], 128, 128, 8
        $region16: #{tpu_custom_call.1} parent=11 // pred_fallthru
          _
        // Predicated region
        $region17: #{tpu_custom_call.1} parent=11 // pred_check
          %p160 = pneg %p85
        $region18: #{tpu_custom_call.1} parent=11 // pred_check_branch
          %162 = sbr.rel (%p160) target = $region20
        $region19: #{tpu_custom_call.1} parent=11 // pred_region
          %s164 = ssub.s32 512, 512
          %165 = vsyncadd [#allocation6], %s164
          %s166 = sshll.u32 [#allocation7], 4
          %s167 = int_to_ptr.vmem [resolvable:$true] %s166
          %172 = dma.hbm_to_vmem [thread:$0]  %s2, 512, %s167, [#allocation6], 128, 128, 8
        $region20: #{tpu_custom_call.1} parent=11 // pred_fallthru
          _
        // Predicated region
        $region21: #{tpu_custom_call.1} parent=11 // pred_check
          %p173 = pneg %p106
        $region22: #{tpu_custom_call.1} parent=11 // pred_check_branch
          %175 = sbr.rel (%p173) target = $region24
        $region23: #{tpu_custom_call.1} parent=11 // pred_region
          _
        $region24: #{tpu_custom_call.1} parent=11 // pred_fallthru
          _
      $region12: #{tpu_custom_call.1} parent=5 // pred_fallthru
        _
      %p176 = scmp.lt.s32.totalorder %s17, 2
      // Predicated region
      $region25: #{tpu_custom_call.1} parent=5 // pred_check
        %p177 = pneg %p176
      $region26: #{tpu_custom_call.1} parent=5 // pred_check_branch
        %179 = sbr.rel (%p177) target = $region28
      $region27: #{tpu_custom_call.1} parent=5 // pred_region
        // Predicated region
        $region29: #{tpu_custom_call.1} parent=27 // pred_check
          %p180 = pneg %p37
        $region30: #{tpu_custom_call.1} parent=27 // pred_check_branch
          %182 = sbr.rel (%p180) target = $region32
        $region31: #{tpu_custom_call.1} parent=27 // pred_region
          %s183 = sand.u32 %s27, 1
          %s184 = scalar_lea.sflag [#allocation3], %s183
          %s185 = sand.u32 %s27, 1
          %s186 = smul.addr %s185, 8
          %s187 = scalar_lea.vmem [#allocation2], %s186
          %s189 = ssub.s32 128, 128
          %190 = vsyncadd %s184, %s189
          %s191 = smul.addr %s17, 128
          %s192 = scalar_lea.hbm %s0, %s191
          %s194 = sshll.u32 %s187, 4
          %s195 = int_to_ptr.vmem [resolvable:$true] %s194
          %197 = dma.hbm_to_vmem [thread:$0]  %s192, 128, %s195, %s184
        $region32: #{tpu_custom_call.1} parent=27 // pred_fallthru
          _
      $region28: #{tpu_custom_call.1} parent=5 // pred_fallthru
        _
      %p198 = scmp.le.s32.totalorder 1, %s17
      %p199 = scmp.lt.s32.totalorder %s17, 3
      %p200 = pnand %p198, %p199
      %p201 = pneg %p200
      // Predicated region
      $region33: #{tpu_custom_call.1} parent=5 // pred_check
        _
      $region34: #{tpu_custom_call.1} parent=5 // pred_check_branch
        %203 = sbr.rel (%p200) target = $region36
      $region35: #{tpu_custom_call.1} parent=5 // pred_region
        %s204 = ssub.s32 %s17, 1
        %s205 = sand.u32 %s30, 1
        %s206 = scalar_lea.sflag [#allocation3], %s205
        %s207 = sand.u32 %s30, 1
        %s208 = smul.addr %s207, 8
        %s209 = scalar_lea.vmem [#allocation2], %s208
        // Predicated region
        $region37: #{tpu_custom_call.1} parent=35 // pred_check
          %p210 = pneg %p43
        $region38: #{tpu_custom_call.1} parent=35 // pred_check_branch
          %212 = sbr.rel (%p210) target = $region40
        $region39: #{tpu_custom_call.1} parent=35 // pred_region
          %213 = dma.done %s206, 128
        $region40: #{tpu_custom_call.1} parent=35 // pred_fallthru
          _
        // Predicated region
        $region41: #{tpu_custom_call.1} parent=35 // pred_check
          %p214 = pneg %p64
        $region42: #{tpu_custom_call.1} parent=35 // pred_check_branch
          %216 = sbr.rel (%p214) target = $region44
        $region43: #{tpu_custom_call.1} parent=35 // pred_region
          %217 = dma.done [#allocation6], 512
        $region44: #{tpu_custom_call.1} parent=35 // pred_fallthru
          _
        // Predicated region
        $region45: #{tpu_custom_call.1} parent=35 // pred_check
          %p218 = pneg %p85
        $region46: #{tpu_custom_call.1} parent=35 // pred_check_branch
          %220 = sbr.rel (%p218) target = $region48
        $region47: #{tpu_custom_call.1} parent=35 // pred_region
          %221 = dma.done [#allocation6], 512
        $region48: #{tpu_custom_call.1} parent=35 // pred_fallthru
          _
        %s222 = sand.u32 %s30, 1
        %s223 = scalar_lea.sflag [#allocation3], %s222
        %s224 = sand.u32 %s30, 1
        %s225 = smul.addr %s224, 8
        %s226 = scalar_lea.vmem [#allocation2], %s225
        %p227 = pneg %p43
        %p228 = pneg %p40
        %p229 = pneg %p64
        %p230 = pneg %p61
        %p231 = pneg %p85
        %p232 = pneg %p82
        %p233 = pneg %p106
        %p234 = pneg %p103
        %p235 = pneg %p132
        %p236 = pneg %p129
        %s237 = sand.u32 %s119, 1
        %s238 = scalar_lea.sflag [#allocation4], %s237
        %s239 = sand.u32 %s119, 1
        %s240 = smul.addr %s239, 8
        %s241 = scalar_lea.vmem [#allocation8], %s240
        %v242 = vlaneseq
        %v243 = vshrl.u32 %v242, 7
        %v244 = vlaneseq
        %v245 = vand.u32 %v244, 127
        %vm246 = vcmp.gt.s32.totalorder %v245, %v243
        %v247 = vsel %vm246, -inf, 0.0
        %v248 = vld [vmem:[%s209] sm:$0xff]
        %v249 = vld [vmem:[#allocation5] sm:$0xff]
        %v250 = vld [vmem:[#allocation5 + $0x8] sm:$0xff]
        %v251 = vld [vmem:[#allocation5 + $0x10] sm:$0xff]
        %v252 = vld [vmem:[#allocation5 + $0x18] sm:$0xff]
        %v253 = vld [vmem:[#allocation7] sm:$0xff]
        %v254 = vld [vmem:[#allocation7 + $0x8] sm:$0xff]
        %v255 = vld [vmem:[#allocation7 + $0x10] sm:$0xff]
        %v256 = vld [vmem:[#allocation7 + $0x18] sm:$0xff]
        %v257 = vld [vmem:[%s3] sm:$0x1]
        %vm258 = vcmask 261120
        %v260 = vsel %vm258, %v248, 0
        %262 = vmatprep.subr.mxu0 0.0
        %263 = vmatpush1.msra.mxu0 %v249
        %264 = vmatprep.subr.mxu0 0.0
        %265 = vmatpush1.msra.mxu0 %v250
        %266 = vmatprep.subr.mxu0 0.0
        %267 = vmatpush1.msra.mxu0 %v251
        %268 = vmatprep.subr.mxu0 0.0
        %269 = vmatpush1.msra.mxu0 %v252
        %270 = vmatprep.subr.mxu0 0.0
        %271 = vmatpush1.msra.mxu0 0.0
        %272 = vmatprep.subr.mxu0 0.0
        %273 = vmatpush1.msra.mxu0 0.0
        %274 = vmatprep.subr.mxu0 0.0
        %275 = vmatpush1.msra.mxu0 0.0
        %276 = vmatprep.subr.mxu0 0.0
        %277 = vmatpush1.msra.mxu0 0.0
        %278 = vmatprep.subr.mxu0 0.0
        %279 = vmatpush1.msra.mxu0 0.0
        %280 = vmatprep.subr.mxu0 0.0
        %281 = vmatpush1.msra.mxu0 0.0
        %282 = vmatprep.subr.mxu0 0.0
        %283 = vmatpush1.msra.mxu0 0.0
        %284 = vmatprep.subr.mxu0 0.0
        %285 = vmatpush1.msra.mxu0 0.0
        %286 = vmatprep.subr.mxu0 0.0
        %287 = vmatpush1.msra.mxu0 0.0
        %288 = vmatprep.subr.mxu0 0.0
        %289 = vmatpush1.msra.mxu0 0.0
        %290 = vmatprep.subr.mxu0 0.0
        %291 = vmatpush1.msra.mxu0 0.0
        %292 = vmatprep.subr.mxu0 0.0
        %293 = vmatpush1.msra.mxu0 0.0
        %294 = vmatprep.subr.mxu0 0.0
        %295 = vmatpush1.msra.mxu0 0.0
        %296 = vmatprep.subr.mxu0 0.0
        %297 = vmatpush1.msra.mxu0 0.0
        %298 = vmatprep.subr.mxu0 0.0
        %299 = vmatpush1.msra.mxu0 0.0
        %300 = vmatprep.subr.mxu0 0.0
        %301 = vmatpush1.msra.mxu0 0.0
        %302 = vmatprep.subr.mxu0 0.0
        %303 = vmatpush1.msra.mxu0 0.0
        %304 = vmatprep.subr.mxu0 0.0
        %305 = vmatpush1.msra.mxu0 0.0
        %306 = vmatprep.subr.mxu0 0.0
        %307 = vmatpush1.msra.mxu0 0.0
        %308 = vmatprep.subr.mxu0 0.0
        %309 = vmatpush1.msra.mxu0 0.0
        %310 = vmatprep.subr.mxu0 0.0
        %311 = vmatpush1.msra.mxu0 0.0
        %312 = vmatprep.subr.mxu0 0.0
        %313 = vmatpush1.msra.mxu0 0.0
        %314 = vmatprep.subr.mxu0 0.0
        %315 = vmatpush1.msra.mxu0 0.0
        %316 = vmatprep.subr.mxu0 0.0
        %317 = vmatpush1.msra.mxu0 0.0
        %318 = vmatprep.subr.mxu0 0.0
        %319 = vmatpush1.msra.mxu0 0.0
        %320 = vmatprep.subr.mxu0 0.0
        %321 = vmatpush1.msra.mxu0 0.0
        %322 = vmatprep.subr.mxu0 0.0
        %323 = vmatpush1.msra.mxu0 0.0
        %324 = vmatprep.subr.mxu0 0.0
        %325 = vmatpush1.msra.mxu0 0.0
        %326 = vmatprep.mubr.f32.mxu0 0.0
        %327 = vmatmul.mubr.f32.gmra.mrb[0].mxu0 %v260
        %v328 = vpop.f32.mrb[0].mxu0
        %v329 = vadd.f32 0.0, %v328
        %v330 = vpop.f32.mrb[0].mxu0
        %331 = vdwg.mxu0
        %333 = vrot.lane.b32.xlu0 %v329, 120
        %v334 = vpop.permute.xlu0 %333
        %335 = vrot.lane.b32.xlu0 %v329, 112
        %v336 = vpop.permute.xlu0 %335
        %337 = vrot.lane.b32.xlu0 %v329, 104
        %v338 = vpop.permute.xlu0 %337
        %339 = vrot.lane.b32.xlu0 %v329, 96
        %v340 = vpop.permute.xlu0 %339
        %vm341 = vcmask 64512
        %v342 = vsel %vm341, %v329, 0
        %v344 = vsel %vm341, %v340, 0
        %346 = vmatprep.subr.mxu0 0.0
        %347 = vmatpush1.xpose.msra.mxu0 %v344
        %348 = vmatprep.subr.mxu0 0.0
        %349 = vmatpush1.xpose.msra.mxu0 0.0
        %350 = vmatprep.subr.mxu0 0.0
        %351 = vmatpush1.xpose.msra.mxu0 0.0
        %352 = vmatprep.subr.mxu0 0.0
        %353 = vmatpush1.xpose.msra.mxu0 0.0
        %354 = vmatprep.subr.mxu0 0.0
        %355 = vmatpush1.xpose.msra.mxu0 0.0
        %356 = vmatprep.subr.mxu0 0.0
        %357 = vmatpush1.xpose.msra.mxu0 0.0
        %358 = vmatprep.subr.mxu0 0.0
        %359 = vmatpush1.xpose.msra.mxu0 0.0
        %360 = vmatprep.subr.mxu0 0.0
        %361 = vmatpush1.xpose.msra.mxu0 0.0
        %362 = vmatprep.subr.mxu0 0.0
        %363 = vmatpush1.xpose.msra.mxu0 0.0
        %364 = vmatprep.subr.mxu0 0.0
        %365 = vmatpush1.xpose.msra.mxu0 0.0
        %366 = vmatprep.subr.mxu0 0.0
        %367 = vmatpush1.xpose.msra.mxu0 0.0
        %368 = vmatprep.subr.mxu0 0.0
        %369 = vmatpush1.xpose.msra.mxu0 0.0
        %370 = vmatprep.subr.mxu0 0.0
        %371 = vmatpush1.xpose.msra.mxu0 0.0
        %372 = vmatprep.subr.mxu0 0.0
        %373 = vmatpush1.xpose.msra.mxu0 0.0
        %374 = vmatprep.subr.mxu0 0.0
        %375 = vmatpush1.xpose.msra.mxu0 0.0
        %376 = vmatprep.subr.mxu0 0.0
        %377 = vmatpush1.xpose.msra.mxu0 0.0
        %378 = vmatprep.subr.mxu0 0.0
        %379 = vmatpush1.xpose.msra.mxu0 0.0
        %380 = vmatprep.subr.mxu0 0.0
        %381 = vmatpush1.xpose.msra.mxu0 0.0
        %382 = vmatprep.subr.mxu0 0.0
        %383 = vmatpush1.xpose.msra.mxu0 0.0
        %384 = vmatprep.subr.mxu0 0.0
        %385 = vmatpush1.xpose.msra.mxu0 0.0
        %386 = vmatprep.subr.mxu0 0.0
        %387 = vmatpush1.xpose.msra.mxu0 0.0
        %388 = vmatprep.subr.mxu0 0.0
        %389 = vmatpush1.xpose.msra.mxu0 0.0
        %390 = vmatprep.subr.mxu0 0.0
        %391 = vmatpush1.xpose.msra.mxu0 0.0
        %392 = vmatprep.subr.mxu0 0.0
        %393 = vmatpush1.xpose.msra.mxu0 0.0
        %394 = vmatprep.subr.mxu0 0.0
        %395 = vmatpush1.xpose.msra.mxu0 0.0
        %396 = vmatprep.subr.mxu0 0.0
        %397 = vmatpush1.xpose.msra.mxu0 0.0
        %398 = vmatprep.subr.mxu0 0.0
        %399 = vmatpush1.xpose.msra.mxu0 0.0
        %400 = vmatprep.subr.mxu0 0.0
        %401 = vmatpush1.xpose.msra.mxu0 0.0
        %402 = vmatprep.subr.mxu0 0.0
        %403 = vmatpush1.xpose.msra.mxu0 0.0
        %404 = vmatprep.subr.mxu0 0.0
        %405 = vmatpush1.xpose.msra.mxu0 0.0
        %406 = vmatprep.subr.mxu0 0.0
        %407 = vmatpush1.xpose.msra.mxu0 0.0
        %408 = vmatprep.subr.mxu0 0.0
        %409 = vmatpush1.xpose.msra.mxu0 0.0
        %410 = vmatprep.mubr.f32.mxu0 0.0
        %411 = vmatmul.mubr.f32.gmra.mrb[0].mxu0 %v342
        %v412 = vpop.f32.mrb[0].mxu0
        %v413 = vadd.f32 %v247, %v412
        %v414 = vpop.f32.mrb[0].mxu0
        %415 = vdwg.mxu0
        %416 = vrot.lane.b32.xlu0 %v334, 96
        %v417 = vpop.permute.xlu0 %416
        %v418 = vsel %vm341, %v334, 0
        %v420 = vsel %vm341, %v417, 0
        %422 = vmatprep.subr.mxu0 0.0
        %423 = vmatpush1.xpose.msra.mxu0 %v420
        %424 = vmatprep.subr.mxu0 0.0
        %425 = vmatpush1.xpose.msra.mxu0 0.0
        %426 = vmatprep.subr.mxu0 0.0
        %427 = vmatpush1.xpose.msra.mxu0 0.0
        %428 = vmatprep.subr.mxu0 0.0
        %429 = vmatpush1.xpose.msra.mxu0 0.0
        %430 = vmatprep.subr.mxu0 0.0
        %431 = vmatpush1.xpose.msra.mxu0 0.0
        %432 = vmatprep.subr.mxu0 0.0
        %433 = vmatpush1.xpose.msra.mxu0 0.0
        %434 = vmatprep.subr.mxu0 0.0
        %435 = vmatpush1.xpose.msra.mxu0 0.0
        %436 = vmatprep.subr.mxu0 0.0
        %437 = vmatpush1.xpose.msra.mxu0 0.0
        %438 = vmatprep.subr.mxu0 0.0
        %439 = vmatpush1.xpose.msra.mxu0 0.0
        %440 = vmatprep.subr.mxu0 0.0
        %441 = vmatpush1.xpose.msra.mxu0 0.0
        %442 = vmatprep.subr.mxu0 0.0
        %443 = vmatpush1.xpose.msra.mxu0 0.0
        %444 = vmatprep.subr.mxu0 0.0
        %445 = vmatpush1.xpose.msra.mxu0 0.0
        %446 = vmatprep.subr.mxu0 0.0
        %447 = vmatpush1.xpose.msra.mxu0 0.0
        %448 = vmatprep.subr.mxu0 0.0
        %449 = vmatpush1.xpose.msra.mxu0 0.0
        %450 = vmatprep.subr.mxu0 0.0
        %451 = vmatpush1.xpose.msra.mxu0 0.0
        %452 = vmatprep.subr.mxu0 0.0
        %453 = vmatpush1.xpose.msra.mxu0 0.0
        %454 = vmatprep.subr.mxu0 0.0
        %455 = vmatpush1.xpose.msra.mxu0 0.0
        %456 = vmatprep.subr.mxu0 0.0
        %457 = vmatpush1.xpose.msra.mxu0 0.0
        %458 = vmatprep.subr.mxu0 0.0
        %459 = vmatpush1.xpose.msra.mxu0 0.0
        %460 = vmatprep.subr.mxu0 0.0
        %461 = vmatpush1.xpose.msra.mxu0 0.0
        %462 = vmatprep.subr.mxu0 0.0
        %463 = vmatpush1.xpose.msra.mxu0 0.0
        %464 = vmatprep.subr.mxu0 0.0
        %465 = vmatpush1.xpose.msra.mxu0 0.0
        %466 = vmatprep.subr.mxu0 0.0
        %467 = vmatpush1.xpose.msra.mxu0 0.0
        %468 = vmatprep.subr.mxu0 0.0
        %469 = vmatpush1.xpose.msra.mxu0 0.0
        %470 = vmatprep.subr.mxu0 0.0
        %471 = vmatpush1.xpose.msra.mxu0 0.0
        %472 = vmatprep.subr.mxu0 0.0
        %473 = vmatpush1.xpose.msra.mxu0 0.0
        %474 = vmatprep.subr.mxu0 0.0
        %475 = vmatpush1.xpose.msra.mxu0 0.0
        %476 = vmatprep.subr.mxu0 0.0
        %477 = vmatpush1.xpose.msra.mxu0 0.0
        %478 = vmatprep.subr.mxu0 0.0
        %479 = vmatpush1.xpose.msra.mxu0 0.0
        %480 = vmatprep.subr.mxu0 0.0
        %481 = vmatpush1.xpose.msra.mxu0 0.0
        %482 = vmatprep.subr.mxu0 0.0
        %483 = vmatpush1.xpose.msra.mxu0 0.0
        %484 = vmatprep.subr.mxu0 0.0
        %485 = vmatpush1.xpose.msra.mxu0 0.0
        %486 = vmatprep.mubr.f32.mxu0 0.0
        %487 = vmatmul.mubr.f32.gmra.mrb[0].mxu0 %v418
        %v488 = vpop.f32.mrb[0].mxu0
        %v489 = vadd.f32 %v247, %v488
        %v490 = vpop.f32.mrb[0].mxu0
        %491 = vdwg.mxu0
        %492 = vrot.lane.b32.xlu0 %v336, 96
        %v493 = vpop.permute.xlu0 %492
        %v494 = vsel %vm341, %v336, 0
        %v496 = vsel %vm341, %v493, 0
        %498 = vmatprep.subr.mxu0 0.0
        %499 = vmatpush1.xpose.msra.mxu0 %v496
        %500 = vmatprep.subr.mxu0 0.0
        %501 = vmatpush1.xpose.msra.mxu0 0.0
        %502 = vmatprep.subr.mxu0 0.0
        %503 = vmatpush1.xpose.msra.mxu0 0.0
        %504 = vmatprep.subr.mxu0 0.0
        %505 = vmatpush1.xpose.msra.mxu0 0.0
        %506 = vmatprep.subr.mxu0 0.0
        %507 = vmatpush1.xpose.msra.mxu0 0.0
        %508 = vmatprep.subr.mxu0 0.0
        %509 = vmatpush1.xpose.msra.mxu0 0.0
        %510 = vmatprep.subr.mxu0 0.0
        %511 = vmatpush1.xpose.msra.mxu0 0.0
        %512 = vmatprep.subr.mxu0 0.0
        %513 = vmatpush1.xpose.msra.mxu0 0.0
        %514 = vmatprep.subr.mxu0 0.0
        %515 = vmatpush1.xpose.msra.mxu0 0.0
        %516 = vmatprep.subr.mxu0 0.0
        %517 = vmatpush1.xpose.msra.mxu0 0.0
        %518 = vmatprep.subr.mxu0 0.0
        %519 = vmatpush1.xpose.msra.mxu0 0.0
        %520 = vmatprep.subr.mxu0 0.0
        %521 = vmatpush1.xpose.msra.mxu0 0.0
        %522 = vmatprep.subr.mxu0 0.0
        %523 = vmatpush1.xpose.msra.mxu0 0.0
        %524 = vmatprep.subr.mxu0 0.0
        %525 = vmatpush1.xpose.msra.mxu0 0.0
        %526 = vmatprep.subr.mxu0 0.0
        %527 = vmatpush1.xpose.msra.mxu0 0.0
        %528 = vmatprep.subr.mxu0 0.0
        %529 = vmatpush1.xpose.msra.mxu0 0.0
        %530 = vmatprep.subr.mxu0 0.0
        %531 = vmatpush1.xpose.msra.mxu0 0.0
        %532 = vmatprep.subr.mxu0 0.0
        %533 = vmatpush1.xpose.msra.mxu0 0.0
        %534 = vmatprep.subr.mxu0 0.0
        %535 = vmatpush1.xpose.msra.mxu0 0.0
        %536 = vmatprep.subr.mxu0 0.0
        %537 = vmatpush1.xpose.msra.mxu0 0.0
        %538 = vmatprep.subr.mxu0 0.0
        %539 = vmatpush1.xpose.msra.mxu0 0.0
        %540 = vmatprep.subr.mxu0 0.0
        %541 = vmatpush1.xpose.msra.mxu0 0.0
        %542 = vmatprep.subr.mxu0 0.0
        %543 = vmatpush1.xpose.msra.mxu0 0.0
        %544 = vmatprep.subr.mxu0 0.0
        %545 = vmatpush1.xpose.msra.mxu0 0.0
        %546 = vmatprep.subr.mxu0 0.0
        %547 = vmatpush1.xpose.msra.mxu0 0.0
        %548 = vmatprep.subr.mxu0 0.0
        %549 = vmatpush1.xpose.msra.mxu0 0.0
        %550 = vmatprep.subr.mxu0 0.0
        %551 = vmatpush1.xpose.msra.mxu0 0.0
        %552 = vmatprep.subr.mxu0 0.0
        %553 = vmatpush1.xpose.msra.mxu0 0.0
        %554 = vmatprep.subr.mxu0 0.0
        %555 = vmatpush1.xpose.msra.mxu0 0.0
        %556 = vmatprep.subr.mxu0 0.0
        %557 = vmatpush1.xpose.msra.mxu0 0.0
        %558 = vmatprep.subr.mxu0 0.0
        %559 = vmatpush1.xpose.msra.mxu0 0.0
        %560 = vmatprep.subr.mxu0 0.0
        %561 = vmatpush1.xpose.msra.mxu0 0.0
        %562 = vmatprep.mubr.f32.mxu0 0.0
        %563 = vmatmul.mubr.f32.gmra.mrb[0].mxu0 %v494
        %v564 = vpop.f32.mrb[0].mxu0
        %v565 = vadd.f32 %v247, %v564
        %v566 = vpop.f32.mrb[0].mxu0
        %567 = vdwg.mxu0
        %568 = vrot.lane.b32.xlu0 %v338, 96
        %v569 = vpop.permute.xlu0 %568
        %v570 = vsel %vm341, %v338, 0
        %v572 = vsel %vm341, %v569, 0
        %574 = vmatprep.subr.mxu0 0.0
        %575 = vmatpush1.xpose.msra.mxu0 %v572
        %576 = vmatprep.subr.mxu0 0.0
        %577 = vmatpush1.xpose.msra.mxu0 0.0
        %578 = vmatprep.subr.mxu0 0.0
        %579 = vmatpush1.xpose.msra.mxu0 0.0
        %580 = vmatprep.subr.mxu0 0.0
        %581 = vmatpush1.xpose.msra.mxu0 0.0
        %582 = vmatprep.subr.mxu0 0.0
        %583 = vmatpush1.xpose.msra.mxu0 0.0
        %584 = vmatprep.subr.mxu0 0.0
        %585 = vmatpush1.xpose.msra.mxu0 0.0
        %586 = vmatprep.subr.mxu0 0.0
        %587 = vmatpush1.xpose.msra.mxu0 0.0
        %588 = vmatprep.subr.mxu0 0.0
        %589 = vmatpush1.xpose.msra.mxu0 0.0
        %590 = vmatprep.subr.mxu0 0.0
        %591 = vmatpush1.xpose.msra.mxu0 0.0
        %592 = vmatprep.subr.mxu0 0.0
        %593 = vmatpush1.xpose.msra.mxu0 0.0
        %594 = vmatprep.subr.mxu0 0.0
        %595 = vmatpush1.xpose.msra.mxu0 0.0
        %596 = vmatprep.subr.mxu0 0.0
        %597 = vmatpush1.xpose.msra.mxu0 0.0
        %598 = vmatprep.subr.mxu0 0.0
        %599 = vmatpush1.xpose.msra.mxu0 0.0
        %600 = vmatprep.subr.mxu0 0.0
        %601 = vmatpush1.xpose.msra.mxu0 0.0
        %602 = vmatprep.subr.mxu0 0.0
        %603 = vmatpush1.xpose.msra.mxu0 0.0
        %604 = vmatprep.subr.mxu0 0.0
        %605 = vmatpush1.xpose.msra.mxu0 0.0
        %606 = vmatprep.subr.mxu0 0.0
        %607 = vmatpush1.xpose.msra.mxu0 0.0
        %608 = vmatprep.subr.mxu0 0.0
        %609 = vmatpush1.xpose.msra.mxu0 0.0
        %610 = vmatprep.subr.mxu0 0.0
        %611 = vmatpush1.xpose.msra.mxu0 0.0
        %612 = vmatprep.subr.mxu0 0.0
        %613 = vmatpush1.xpose.msra.mxu0 0.0
        %614 = vmatprep.subr.mxu0 0.0
        %615 = vmatpush1.xpose.msra.mxu0 0.0
        %616 = vmatprep.subr.mxu0 0.0
        %617 = vmatpush1.xpose.msra.mxu0 0.0
        %618 = vmatprep.subr.mxu0 0.0
        %619 = vmatpush1.xpose.msra.mxu0 0.0
        %620 = vmatprep.subr.mxu0 0.0
        %621 = vmatpush1.xpose.msra.mxu0 0.0
        %622 = vmatprep.subr.mxu0 0.0
        %623 = vmatpush1.xpose.msra.mxu0 0.0
        %624 = vmatprep.subr.mxu0 0.0
        %625 = vmatpush1.xpose.msra.mxu0 0.0
        %626 = vmatprep.subr.mxu0 0.0
        %627 = vmatpush1.xpose.msra.mxu0 0.0
        %628 = vmatprep.subr.mxu0 0.0
        %629 = vmatpush1.xpose.msra.mxu0 0.0
        %630 = vmatprep.subr.mxu0 0.0
        %631 = vmatpush1.xpose.msra.mxu0 0.0
        %632 = vmatprep.subr.mxu0 0.0
        %633 = vmatpush1.xpose.msra.mxu0 0.0
        %634 = vmatprep.subr.mxu0 0.0
        %635 = vmatpush1.xpose.msra.mxu0 0.0
        %636 = vmatprep.subr.mxu0 0.0
        %637 = vmatpush1.xpose.msra.mxu0 0.0
        %638 = vmatprep.mubr.f32.mxu0 0.0
        %639 = vmatmul.mubr.f32.gmra.mrb[0].mxu0 %v570
        %v640 = vpop.f32.mrb[0].mxu0
        %v641 = vadd.f32 %v247, %v640
        %v642 = vpop.f32.mrb[0].mxu0
        %643 = vdwg.mxu0
        %v644 = vsel %vm341, %v413, -inf
        %645 = vmax.xlane.f32.xlu0 %v644
        %v646 = vpop.xlane.xlu0 %645
        %v647 = vsel %vm341, %v489, -inf
        %648 = vmax.xlane.f32.xlu0 %v647
        %v649 = vpop.xlane.xlu0 %648
        %v650 = vsel %vm341, %v565, -inf
        %651 = vmax.xlane.f32.xlu0 %v650
        %v652 = vpop.xlane.xlu0 %651
        %v653 = vsel %vm341, %v641, -inf
        %654 = vmax.xlane.f32.xlu0 %v653
        %v655 = vpop.xlane.xlu0 %654
        %v656 = vsub.f32 %v413, %v646
        %v657 = vsub.f32 %v489, %v649
        %v658 = vsub.f32 %v565, %v652
        %v659 = vsub.f32 %v641, %v655
        %v660 = vmul.f32 %v656, 1.442695
        %v661 = vpow.pop %v660
        %v662 = vmul.f32 %v657, 1.442695
        %v663 = vpow.pop %v662
        %v664 = vmul.f32 %v658, 1.442695
        %v665 = vpow.pop %v664
        %v666 = vmul.f32 %v659, 1.442695
        %v667 = vpow.pop %v666
        %v668 = vsel %vm341, %v661, 0.0
        %669 = vadd.xlane.f32.xlu0 %v668
        %v670 = vpop.xlane.xlu0 %669
        %v671 = vsel %vm341, %v663, 0.0
        %672 = vadd.xlane.f32.xlu0 %v671
        %v673 = vpop.xlane.xlu0 %672
        %v674 = vsel %vm341, %v665, 0.0
        %675 = vadd.xlane.f32.xlu0 %v674
        %v676 = vpop.xlane.xlu0 %675
        %v677 = vsel %vm341, %v667, 0.0
        %678 = vadd.xlane.f32.xlu0 %v677
        %v679 = vpop.xlane.xlu0 %678
        %v680 = vrcp.pop %v670
        %v681 = vrcp.pop %v673
        %v682 = vrcp.pop %v676
        %v683 = vrcp.pop %v679
        %v684 = vmul.f32 %v661, %v680
        %v685 = vmul.f32 %v663, %v681
        %v686 = vmul.f32 %v665, %v682
        %v687 = vmul.f32 %v667, %v683
        %688 = vrot.lane.b32.xlu0 %v329, 64
        %v689 = vpop.permute.xlu0 %688
        %v692 = vsel %vm341, %v684, 0
        %694 = vmatprep.subr.mxu0 0.0
        %695 = vmatpush1.msra.mxu0 %v689
        %696 = vmatprep.subr.mxu0 0.0
        %697 = vmatpush1.msra.mxu0 0.0
        %698 = vmatprep.subr.mxu0 0.0
        %699 = vmatpush1.msra.mxu0 0.0
        %700 = vmatprep.subr.mxu0 0.0
        %701 = vmatpush1.msra.mxu0 0.0
        %702 = vmatprep.subr.mxu0 0.0
        %703 = vmatpush1.msra.mxu0 0.0
        %704 = vmatprep.subr.mxu0 0.0
        %705 = vmatpush1.msra.mxu0 0.0
        %706 = vmatprep.subr.mxu0 0.0
        %707 = vmatpush1.msra.mxu0 0.0
        %708 = vmatprep.subr.mxu0 0.0
        %709 = vmatpush1.msra.mxu0 0.0
        %710 = vmatprep.subr.mxu0 0.0
        %711 = vmatpush1.msra.mxu0 0.0
        %712 = vmatprep.subr.mxu0 0.0
        %713 = vmatpush1.msra.mxu0 0.0
        %714 = vmatprep.subr.mxu0 0.0
        %715 = vmatpush1.msra.mxu0 0.0
        %716 = vmatprep.subr.mxu0 0.0
        %717 = vmatpush1.msra.mxu0 0.0
        %718 = vmatprep.subr.mxu0 0.0
        %719 = vmatpush1.msra.mxu0 0.0
        %720 = vmatprep.subr.mxu0 0.0
        %721 = vmatpush1.msra.mxu0 0.0
        %722 = vmatprep.subr.mxu0 0.0
        %723 = vmatpush1.msra.mxu0 0.0
        %724 = vmatprep.subr.mxu0 0.0
        %725 = vmatpush1.msra.mxu0 0.0
        %726 = vmatprep.subr.mxu0 0.0
        %727 = vmatpush1.msra.mxu0 0.0
        %728 = vmatprep.subr.mxu0 0.0
        %729 = vmatpush1.msra.mxu0 0.0
        %730 = vmatprep.subr.mxu0 0.0
        %731 = vmatpush1.msra.mxu0 0.0
        %732 = vmatprep.subr.mxu0 0.0
        %733 = vmatpush1.msra.mxu0 0.0
        %734 = vmatprep.subr.mxu0 0.0
        %735 = vmatpush1.msra.mxu0 0.0
        %736 = vmatprep.subr.mxu0 0.0
        %737 = vmatpush1.msra.mxu0 0.0
        %738 = vmatprep.subr.mxu0 0.0
        %739 = vmatpush1.msra.mxu0 0.0
        %740 = vmatprep.subr.mxu0 0.0
        %741 = vmatpush1.msra.mxu0 0.0
        %742 = vmatprep.subr.mxu0 0.0
        %743 = vmatpush1.msra.mxu0 0.0
        %744 = vmatprep.subr.mxu0 0.0
        %745 = vmatpush1.msra.mxu0 0.0
        %746 = vmatprep.subr.mxu0 0.0
        %747 = vmatpush1.msra.mxu0 0.0
        %748 = vmatprep.subr.mxu0 0.0
        %749 = vmatpush1.msra.mxu0 0.0
        %750 = vmatprep.subr.mxu0 0.0
        %751 = vmatpush1.msra.mxu0 0.0
        %752 = vmatprep.subr.mxu0 0.0
        %753 = vmatpush1.msra.mxu0 0.0
        %754 = vmatprep.subr.mxu0 0.0
        %755 = vmatpush1.msra.mxu0 0.0
        %756 = vmatprep.subr.mxu0 0.0
        %757 = vmatpush1.msra.mxu0 0.0
        %758 = vmatprep.mubr.f32.mxu0 0.0
        %759 = vmatmul.mubr.f32.gmra.mrb[0].mxu0 %v692
        %v760 = vpop.f32.mrb[0].mxu0
        %v761 = vadd.f32 0.0, %v760
        %v762 = vpop.f32.mrb[0].mxu0
        %763 = vdwg.mxu0
        %764 = vrot.lane.b32.xlu0 %v334, 64
        %v765 = vpop.permute.xlu0 %764
        %v768 = vsel %vm341, %v685, 0
        %770 = vmatprep.subr.mxu0 0.0
        %771 = vmatpush1.msra.mxu0 %v765
        %772 = vmatprep.subr.mxu0 0.0
        %773 = vmatpush1.msra.mxu0 0.0
        %774 = vmatprep.subr.mxu0 0.0
        %775 = vmatpush1.msra.mxu0 0.0
        %776 = vmatprep.subr.mxu0 0.0
        %777 = vmatpush1.msra.mxu0 0.0
        %778 = vmatprep.subr.mxu0 0.0
        %779 = vmatpush1.msra.mxu0 0.0
        %780 = vmatprep.subr.mxu0 0.0
        %781 = vmatpush1.msra.mxu0 0.0
        %782 = vmatprep.subr.mxu0 0.0
        %783 = vmatpush1.msra.mxu0 0.0
        %784 = vmatprep.subr.mxu0 0.0
        %785 = vmatpush1.msra.mxu0 0.0
        %786 = vmatprep.subr.mxu0 0.0
        %787 = vmatpush1.msra.mxu0 0.0
        %788 = vmatprep.subr.mxu0 0.0
        %789 = vmatpush1.msra.mxu0 0.0
        %790 = vmatprep.subr.mxu0 0.0
        %791 = vmatpush1.msra.mxu0 0.0
        %792 = vmatprep.subr.mxu0 0.0
        %793 = vmatpush1.msra.mxu0 0.0
        %794 = vmatprep.subr.mxu0 0.0
        %795 = vmatpush1.msra.mxu0 0.0
        %796 = vmatprep.subr.mxu0 0.0
        %797 = vmatpush1.msra.mxu0 0.0
        %798 = vmatprep.subr.mxu0 0.0
        %799 = vmatpush1.msra.mxu0 0.0
        %800 = vmatprep.subr.mxu0 0.0
        %801 = vmatpush1.msra.mxu0 0.0
        %802 = vmatprep.subr.mxu0 0.0
        %803 = vmatpush1.msra.mxu0 0.0
        %804 = vmatprep.subr.mxu0 0.0
        %805 = vmatpush1.msra.mxu0 0.0
        %806 = vmatprep.subr.mxu0 0.0
        %807 = vmatpush1.msra.mxu0 0.0
        %808 = vmatprep.subr.mxu0 0.0
        %809 = vmatpush1.msra.mxu0 0.0
        %810 = vmatprep.subr.mxu0 0.0
        %811 = vmatpush1.msra.mxu0 0.0
        %812 = vmatprep.subr.mxu0 0.0
        %813 = vmatpush1.msra.mxu0 0.0
        %814 = vmatprep.subr.mxu0 0.0
        %815 = vmatpush1.msra.mxu0 0.0
        %816 = vmatprep.subr.mxu0 0.0
        %817 = vmatpush1.msra.mxu0 0.0
        %818 = vmatprep.subr.mxu0 0.0
        %819 = vmatpush1.msra.mxu0 0.0
        %820 = vmatprep.subr.mxu0 0.0
        %821 = vmatpush1.msra.mxu0 0.0
        %822 = vmatprep.subr.mxu0 0.0
        %823 = vmatpush1.msra.mxu0 0.0
        %824 = vmatprep.subr.mxu0 0.0
        %825 = vmatpush1.msra.mxu0 0.0
        %826 = vmatprep.subr.mxu0 0.0
        %827 = vmatpush1.msra.mxu0 0.0
        %828 = vmatprep.subr.mxu0 0.0
        %829 = vmatpush1.msra.mxu0 0.0
        %830 = vmatprep.subr.mxu0 0.0
        %831 = vmatpush1.msra.mxu0 0.0
        %832 = vmatprep.subr.mxu0 0.0
        %833 = vmatpush1.msra.mxu0 0.0
        %834 = vmatprep.mubr.f32.mxu0 0.0
        %835 = vmatmul.mubr.f32.gmra.mrb[0].mxu0 %v768
        %v836 = vpop.f32.mrb[0].mxu0
        %v837 = vadd.f32 0.0, %v836
        %v838 = vpop.f32.mrb[0].mxu0
        %839 = vdwg.mxu0
        %840 = vrot.lane.b32.xlu0 %v336, 64
        %v841 = vpop.permute.xlu0 %840
        %v844 = vsel %vm341, %v686, 0
        %846 = vmatprep.subr.mxu0 0.0
        %847 = vmatpush1.msra.mxu0 %v841
        %848 = vmatprep.subr.mxu0 0.0
        %849 = vmatpush1.msra.mxu0 0.0
        %850 = vmatprep.subr.mxu0 0.0
        %851 = vmatpush1.msra.mxu0 0.0
        %852 = vmatprep.subr.mxu0 0.0
        %853 = vmatpush1.msra.mxu0 0.0
        %854 = vmatprep.subr.mxu0 0.0
        %855 = vmatpush1.msra.mxu0 0.0
        %856 = vmatprep.subr.mxu0 0.0
        %857 = vmatpush1.msra.mxu0 0.0
        %858 = vmatprep.subr.mxu0 0.0
        %859 = vmatpush1.msra.mxu0 0.0
        %860 = vmatprep.subr.mxu0 0.0
        %861 = vmatpush1.msra.mxu0 0.0
        %862 = vmatprep.subr.mxu0 0.0
        %863 = vmatpush1.msra.mxu0 0.0
        %864 = vmatprep.subr.mxu0 0.0
        %865 = vmatpush1.msra.mxu0 0.0
        %866 = vmatprep.subr.mxu0 0.0
        %867 = vmatpush1.msra.mxu0 0.0
        %868 = vmatprep.subr.mxu0 0.0
        %869 = vmatpush1.msra.mxu0 0.0
        %870 = vmatprep.subr.mxu0 0.0
        %871 = vmatpush1.msra.mxu0 0.0
        %872 = vmatprep.subr.mxu0 0.0
        %873 = vmatpush1.msra.mxu0 0.0
        %874 = vmatprep.subr.mxu0 0.0
        %875 = vmatpush1.msra.mxu0 0.0
        %876 = vmatprep.subr.mxu0 0.0
        %877 = vmatpush1.msra.mxu0 0.0
        %878 = vmatprep.subr.mxu0 0.0
        %879 = vmatpush1.msra.mxu0 0.0
        %880 = vmatprep.subr.mxu0 0.0
        %881 = vmatpush1.msra.mxu0 0.0
        %882 = vmatprep.subr.mxu0 0.0
        %883 = vmatpush1.msra.mxu0 0.0
        %884 = vmatprep.subr.mxu0 0.0
        %885 = vmatpush1.msra.mxu0 0.0
        %886 = vmatprep.subr.mxu0 0.0
        %887 = vmatpush1.msra.mxu0 0.0
        %888 = vmatprep.subr.mxu0 0.0
        %889 = vmatpush1.msra.mxu0 0.0
        %890 = vmatprep.subr.mxu0 0.0
        %891 = vmatpush1.msra.mxu0 0.0
        %892 = vmatprep.subr.mxu0 0.0
        %893 = vmatpush1.msra.mxu0 0.0
        %894 = vmatprep.subr.mxu0 0.0
        %895 = vmatpush1.msra.mxu0 0.0
        %896 = vmatprep.subr.mxu0 0.0
        %897 = vmatpush1.msra.mxu0 0.0
        %898 = vmatprep.subr.mxu0 0.0
        %899 = vmatpush1.msra.mxu0 0.0
        %900 = vmatprep.subr.mxu0 0.0
        %901 = vmatpush1.msra.mxu0 0.0
        %902 = vmatprep.subr.mxu0 0.0
        %903 = vmatpush1.msra.mxu0 0.0
        %904 = vmatprep.subr.mxu0 0.0
        %905 = vmatpush1.msra.mxu0 0.0
        %906 = vmatprep.subr.mxu0 0.0
        %907 = vmatpush1.msra.mxu0 0.0
        %908 = vmatprep.subr.mxu0 0.0
        %909 = vmatpush1.msra.mxu0 0.0
        %910 = vmatprep.mubr.f32.mxu0 0.0
        %911 = vmatmul.mubr.f32.gmra.mrb[0].mxu0 %v844
        %v912 = vpop.f32.mrb[0].mxu0
        %v913 = vadd.f32 0.0, %v912
        %v914 = vpop.f32.mrb[0].mxu0
        %915 = vdwg.mxu0
        %916 = vrot.lane.b32.xlu0 %v338, 64
        %v917 = vpop.permute.xlu0 %916
        %v920 = vsel %vm341, %v687, 0
        %922 = vmatprep.subr.mxu0 0.0
        %923 = vmatpush1.msra.mxu0 %v917
        %924 = vmatprep.subr.mxu0 0.0
        %925 = vmatpush1.msra.mxu0 0.0
        %926 = vmatprep.subr.mxu0 0.0
        %927 = vmatpush1.msra.mxu0 0.0
        %928 = vmatprep.subr.mxu0 0.0
        %929 = vmatpush1.msra.mxu0 0.0
        %930 = vmatprep.subr.mxu0 0.0
        %931 = vmatpush1.msra.mxu0 0.0
        %932 = vmatprep.subr.mxu0 0.0
        %933 = vmatpush1.msra.mxu0 0.0
        %934 = vmatprep.subr.mxu0 0.0
        %935 = vmatpush1.msra.mxu0 0.0
        %936 = vmatprep.subr.mxu0 0.0
        %937 = vmatpush1.msra.mxu0 0.0
        %938 = vmatprep.subr.mxu0 0.0
        %939 = vmatpush1.msra.mxu0 0.0
        %940 = vmatprep.subr.mxu0 0.0
        %941 = vmatpush1.msra.mxu0 0.0
        %942 = vmatprep.subr.mxu0 0.0
        %943 = vmatpush1.msra.mxu0 0.0
        %944 = vmatprep.subr.mxu0 0.0
        %945 = vmatpush1.msra.mxu0 0.0
        %946 = vmatprep.subr.mxu0 0.0
        %947 = vmatpush1.msra.mxu0 0.0
        %948 = vmatprep.subr.mxu0 0.0
        %949 = vmatpush1.msra.mxu0 0.0
        %950 = vmatprep.subr.mxu0 0.0
        %951 = vmatpush1.msra.mxu0 0.0
        %952 = vmatprep.subr.mxu0 0.0
        %953 = vmatpush1.msra.mxu0 0.0
        %954 = vmatprep.subr.mxu0 0.0
        %955 = vmatpush1.msra.mxu0 0.0
        %956 = vmatprep.subr.mxu0 0.0
        %957 = vmatpush1.msra.mxu0 0.0
        %958 = vmatprep.subr.mxu0 0.0
        %959 = vmatpush1.msra.mxu0 0.0
        %960 = vmatprep.subr.mxu0 0.0
        %961 = vmatpush1.msra.mxu0 0.0
        %962 = vmatprep.subr.mxu0 0.0
        %963 = vmatpush1.msra.mxu0 0.0
        %964 = vmatprep.subr.mxu0 0.0
        %965 = vmatpush1.msra.mxu0 0.0
        %966 = vmatprep.subr.mxu0 0.0
        %967 = vmatpush1.msra.mxu0 0.0
        %968 = vmatprep.subr.mxu0 0.0
        %969 = vmatpush1.msra.mxu0 0.0
        %970 = vmatprep.subr.mxu0 0.0
        %971 = vmatpush1.msra.mxu0 0.0
        %972 = vmatprep.subr.mxu0 0.0
        %973 = vmatpush1.msra.mxu0 0.0
        %974 = vmatprep.subr.mxu0 0.0
        %975 = vmatpush1.msra.mxu0 0.0
        %976 = vmatprep.subr.mxu0 0.0
        %977 = vmatpush1.msra.mxu0 0.0
        %978 = vmatprep.subr.mxu0 0.0
        %979 = vmatpush1.msra.mxu0 0.0
        %980 = vmatprep.subr.mxu0 0.0
        %981 = vmatpush1.msra.mxu0 0.0
        %982 = vmatprep.subr.mxu0 0.0
        %983 = vmatpush1.msra.mxu0 0.0
        %984 = vmatprep.subr.mxu0 0.0
        %985 = vmatpush1.msra.mxu0 0.0
        %986 = vmatprep.mubr.f32.mxu0 0.0
        %987 = vmatmul.mubr.f32.gmra.mrb[0].mxu0 %v920
        %v988 = vpop.f32.mrb[0].mxu0
        %v989 = vadd.f32 0.0, %v988
        %v990 = vpop.f32.mrb[0].mxu0
        %991 = vdwg.mxu0
        %993 = vrot.lane.b32.xlu0 %v837, 8
        %v994 = vpop.permute.xlu0 %993
        %997 = vrot.lane.b32.xlu0 %v913, 16
        %v998 = vpop.permute.xlu0 %997
        %1001 = vrot.lane.b32.xlu0 %v989, 24
        %v1002 = vpop.permute.xlu0 %1001
        %v1004 = vsel %vm341, %v761, %v994
        %vm1005 = vcmask 130048
        %v1006 = vsel %vm1005, %v1004, %v998
        %vm1007 = vcmask 195584
        %v1008 = vsel %vm1007, %v1006, %v1002
        %v1010 = vlaneseq
        %v1011 = vshrl.u32 %v1010, 7
        %v1012 = vsub.s32 0, %v1011
        %v1013 = vrot.slane %v257, %v1012
        %v1016 = vsel %vm258, %v1008, 0
        %1018 = vmatprep.subr.mxu0 0.0
        %1019 = vmatpush1.msra.mxu0 %v253
        %1020 = vmatprep.subr.mxu0 0.0
        %1021 = vmatpush1.msra.mxu0 %v254
        %1022 = vmatprep.subr.mxu0 0.0
        %1023 = vmatpush1.msra.mxu0 %v255
        %1024 = vmatprep.subr.mxu0 0.0
        %1025 = vmatpush1.msra.mxu0 %v256
        %1026 = vmatprep.subr.mxu0 0.0
        %1027 = vmatpush1.msra.mxu0 0.0
        %1028 = vmatprep.subr.mxu0 0.0
        %1029 = vmatpush1.msra.mxu0 0.0
        %1030 = vmatprep.subr.mxu0 0.0
        %1031 = vmatpush1.msra.mxu0 0.0
        %1032 = vmatprep.subr.mxu0 0.0
        %1033 = vmatpush1.msra.mxu0 0.0
        %1034 = vmatprep.subr.mxu0 0.0
        %1035 = vmatpush1.msra.mxu0 0.0
        %1036 = vmatprep.subr.mxu0 0.0
        %1037 = vmatpush1.msra.mxu0 0.0
        %1038 = vmatprep.subr.mxu0 0.0
        %1039 = vmatpush1.msra.mxu0 0.0
        %1040 = vmatprep.subr.mxu0 0.0
        %1041 = vmatpush1.msra.mxu0 0.0
        %1042 = vmatprep.subr.mxu0 0.0
        %1043 = vmatpush1.msra.mxu0 0.0
        %1044 = vmatprep.subr.mxu0 0.0
        %1045 = vmatpush1.msra.mxu0 0.0
        %1046 = vmatprep.subr.mxu0 0.0
        %1047 = vmatpush1.msra.mxu0 0.0
        %1048 = vmatprep.subr.mxu0 0.0
        %1049 = vmatpush1.msra.mxu0 0.0
        %1050 = vmatprep.subr.mxu0 0.0
        %1051 = vmatpush1.msra.mxu0 0.0
        %1052 = vmatprep.subr.mxu0 0.0
        %1053 = vmatpush1.msra.mxu0 0.0
        %1054 = vmatprep.subr.mxu0 0.0
        %1055 = vmatpush1.msra.mxu0 0.0
        %1056 = vmatprep.subr.mxu0 0.0
        %1057 = vmatpush1.msra.mxu0 0.0
        %1058 = vmatprep.subr.mxu0 0.0
        %1059 = vmatpush1.msra.mxu0 0.0
        %1060 = vmatprep.subr.mxu0 0.0
        %1061 = vmatpush1.msra.mxu0 0.0
        %1062 = vmatprep.subr.mxu0 0.0
        %1063 = vmatpush1.msra.mxu0 0.0
        %1064 = vmatprep.subr.mxu0 0.0
        %1065 = vmatpush1.msra.mxu0 0.0
        %1066 = vmatprep.subr.mxu0 0.0
        %1067 = vmatpush1.msra.mxu0 0.0
        %1068 = vmatprep.subr.mxu0 0.0
        %1069 = vmatpush1.msra.mxu0 0.0
        %1070 = vmatprep.subr.mxu0 0.0
        %1071 = vmatpush1.msra.mxu0 0.0
        %1072 = vmatprep.subr.mxu0 0.0
        %1073 = vmatpush1.msra.mxu0 0.0
        %1074 = vmatprep.subr.mxu0 0.0
        %1075 = vmatpush1.msra.mxu0 0.0
        %1076 = vmatprep.subr.mxu0 0.0
        %1077 = vmatpush1.msra.mxu0 0.0
        %1078 = vmatprep.subr.mxu0 0.0
        %1079 = vmatpush1.msra.mxu0 0.0
        %1080 = vmatprep.subr.mxu0 0.0
        %1081 = vmatpush1.msra.mxu0 0.0
        %1082 = vmatprep.mubr.f32.mxu0 0.0
        %1083 = vmatmul.mubr.f32.gmra.mrb[0].mxu0 %v1016
        %v1084 = vpop.f32.mrb[0].mxu0
        %v1085 = vadd.f32 %v1013, %v1084
        %v1086 = vpop.f32.mrb[0].mxu0
        %1087 = vdwg.mxu0
        %1088 = vst.msk [vmem:[%s241] sm:$0xff] %vm258, %v1085
        %s1089 = sand.u32 %s119, 1
        %s1090 = scalar_lea.sflag [#allocation4], %s1089
        %s1091 = sand.u32 %s119, 1
        %s1092 = smul.addr %s1091, 8
        %s1093 = scalar_lea.vmem [#allocation8], %s1092
        // Predicated region
        $region49: #{tpu_custom_call.1} parent=35 // pred_check
          %p1094 = pneg %p129
        $region50: #{tpu_custom_call.1} parent=35 // pred_check_branch
          %1096 = sbr.rel (%p1094) target = $region52
        $region51: #{tpu_custom_call.1} parent=35 // pred_region
          %s1098 = ssub.s32 128, 128
          %1099 = vsyncadd %s1090, %s1098
          %s1100 = smul.addr %s22, 128
          %s1101 = scalar_lea.hbm %s4, %s1100
          %s1103 = sshll.u32 %s1093, 4
          %s1104 = int_to_ptr.vmem [resolvable:$true] %s1103
          %1106 = dma.vmem_to_hbm [thread:$0]  %s1104, 128, %s1101, %s1090
        $region52: #{tpu_custom_call.1} parent=35 // pred_fallthru
          _
      $region36: #{tpu_custom_call.1} parent=5 // pred_fallthru
        _
      %p1107 = scmp.le.s32.totalorder 2, %s17
      // Predicated region
      $region53: #{tpu_custom_call.1} parent=5 // pred_check
        %p1108 = pneg %p1107
      $region54: #{tpu_custom_call.1} parent=5 // pred_check_branch
        %1110 = sbr.rel (%p1108) target = $region56
      $region55: #{tpu_custom_call.1} parent=5 // pred_region
        %s1111 = ssub.s32 %s17, 2
        // Predicated region
        $region57: #{tpu_custom_call.1} parent=55 // pred_check
          %p1112 = pneg %p135
        $region58: #{tpu_custom_call.1} parent=55 // pred_check_branch
          %1114 = sbr.rel (%p1112) target = $region60
        $region59: #{tpu_custom_call.1} parent=55 // pred_region
          %s1115 = sand.u32 %s120, 1
          %s1116 = scalar_lea.sflag [#allocation4], %s1115
          %s1117 = sand.u32 %s120, 1
          %s1118 = smul.addr %s1117, 8
          %s1119 = scalar_lea.vmem [#allocation8], %s1118
          %1120 = dma.done %s1116, 128
        $region60: #{tpu_custom_call.1} parent=55 // pred_fallthru
          _
      $region56: #{tpu_custom_call.1} parent=5 // pred_fallthru
        _
    $region6: #{tpu_custom_call.1} parent=1 // loop_footer
      %s21 = sadd.s32 1, %s17
    $region7: #{tpu_custom_call.1} parent=1 // loop_footer_branch
      %16 = sbr.rel target = $region3
    $region8: #{tpu_custom_call.1} parent=1 // loop_exit
      _
    %1121 = vsyncpa [#allocation3], 1
    %s1122 = scalar_lea.sflag [#allocation3], 1
    %1123 = vsyncpa %s1122, 1
    %1124 = vsyncpa [#allocation6], 1
    %1125 = vsyncpa [#allocation4], 1
    %s1126 = scalar_lea.sflag [#allocation4], 1
    %1127 = vsyncpa %s1126, 1

</llo_original>
